<compile_context>
chip_gen: v5e
topology: v5e:2x2
jax: 0.10.0
libtpu: 0.0.40
codegen_flags: <defaults>
</compile_context>

<pallas_src>
from functools import partial

import jax
import jax.numpy as jnp
from jax.experimental import pallas as pl
from jax.experimental.pallas import tpu as pltpu


# ---------------------------------------------------------------------------
# Pallas kernel
# ---------------------------------------------------------------------------
def _rope_kernel(cos_ref, sin_ref, x_ref, o_ref):
    # cos/sin: (TR, C) f32, broadcast over leading TBH dim.
    # x/o:     (TBH, TR, C) input dtype.
    x = x_ref[...]
    last = x.ndim - 1
    c = x.shape[last]

    # pltpu.roll requires non-negative shifts: shift=c-1 == roll by -1.
    x_next = pltpu.roll(x, shift=c - 1, axis=last)   # y[i] = x[(i+1) % c]
    x_prev = pltpu.roll(x, shift=1, axis=last)       # y[i] = x[(i-1) % c]

    lane = jax.lax.broadcasted_iota(jnp.int32, x.shape, last)
    rot = jnp.where((lane & 1) == 0, x_next, x_prev).astype(jnp.float32)

    out = x.astype(jnp.float32) * cos_ref[...] + rot * sin_ref[...]
    o_ref[...] = out.astype(o_ref.dtype)


# ---------------------------------------------------------------------------
# Tiling helpers (all static-shape Python)
# ---------------------------------------------------------------------------
def _largest_divisor(n, cap):
    cap = max(1, min(n, cap))
    for d in range(cap, 0, -1):
        if n % d == 0:
            return d
    return 1


_ROW_TILE_CAP = 1024  # keep table blocks small (review: shrink TR, grow TBH)


def _choose_row_tiling(length, lane=128, cap=_ROW_TILE_CAP):
    """Return (R_pad, TR): padded row count and a row tile that divides it."""
    rows = -(-length // lane)          # ceil
    if rows <= cap:
        return rows, rows              # single full-extent row tile (always legal)
    for d in range(cap, 7, -1):        # need TR % 8 == 0 when TR < R
        if d % 8 == 0 and rows % d == 0:
            return rows, d
    tr = 512                           # awkward row count: pad rows instead of
    rows_pad = -(-rows // tr) * tr     # ballooning to a single giant tile
    return rows_pad, tr


# ---------------------------------------------------------------------------
# Jitted forward (tables + pallas_call); shapes are static under jit so the
# tiny cos/sin build and all reshapes are compiled/cached per (shape, dtype).
# ---------------------------------------------------------------------------
def _rope_forward_impl(t, freqs_param, offset):
    B, H, S, D = t.shape
    assert D == 2 * freqs_param.shape[0], "head_dim must equal rotary dim"

    # ---- tables (tiny, plain JAX) ---------------------------------------
    pos = jnp.arange(S, dtype=jnp.float32) + offset          # (arange + offset)/1.0
    f = pos[:, None] * freqs_param[None, :]                  # (S, D//2)
    f = jnp.repeat(f, 2, axis=-1)                            # '... n -> ... (n r)', r=2
    cos = jnp.cos(f)
    sin = jnp.sin(f)
    d_even = (jnp.arange(D) % 2) == 0
    ssin = jnp.where(d_even, -sin, sin)                      # signed sin table

    # ---- lane-dense layout: flatten (S,D) and pad to 128-lane rows -------
    BH = B * H
    L = S * D
    C = 128
    R_pad, TR = _choose_row_tiling(L, C)
    L_pad = R_pad * C

    x = t.reshape(BH, L)
    cos_f = cos.reshape(L)
    ssin_f = ssin.reshape(L)
    if L_pad > L:
        x = jnp.pad(x, ((0, 0), (0, L_pad - L)))
        cos_f = jnp.pad(cos_f, (0, L_pad - L))
        ssin_f = jnp.pad(ssin_f, (0, L_pad - L))
    x = x.reshape(BH, R_pad, C)
    cos_t = cos_f.reshape(R_pad, C)
    ssin_t = ssin_f.reshape(R_pad, C)

    # ---- block sizing: ~6 MiB of the *actual* dtype per x block ----------
    itemsize = jnp.dtype(t.dtype).itemsize
    target_bytes = 6 * 1024 * 1024
    TBH = _largest_divisor(BH, max(1, target_bytes // (TR * C * itemsize)))
    n_row_tiles = R_pad // TR
    if n_row_tiles == 1 and TBH == BH and BH > 1:
        # give the 2nd TensorCore (v7x megacore) something to do
        TBH = _largest_divisor(BH, BH // 2)
    grid = (n_row_tiles, BH // TBH)                           # rows OUTER, BH INNER

    table_spec = pl.BlockSpec((TR, C), lambda j, i: (j, 0))   # const over inner axis
    x_spec = pl.BlockSpec((TBH, TR, C), lambda j, i: (i, j, 0))

    out = pl.pallas_call(
        _rope_kernel,
        out_shape=jax.ShapeDtypeStruct((BH, R_pad, C), t.dtype),
        grid_spec=pltpu.PrefetchScalarGridSpec(
            num_scalar_prefetch=0,
            grid=grid,
            in_specs=[table_spec, table_spec, x_spec],
            out_specs=x_spec,
        ),
        compiler_params=pltpu.CompilerParams(
            dimension_semantics=("parallel", "parallel"),
            vmem_limit_bytes=48 * 1024 * 1024,
        ),
        cost_estimate=pl.CostEstimate(
            flops=4 * BH * R_pad * C,
            transcendentals=0,
            bytes_accessed=2 * BH * R_pad * C * itemsize + 2 * R_pad * C * 4,
        ),
    )(cos_t, ssin_t, x)

    out = out.reshape(BH, L_pad)
    if L_pad > L:
        out = out[:, :L]
    return out.reshape(B, H, S, D)


_rope_forward = jax.jit(_rope_forward_impl)


# ---------------------------------------------------------------------------
# Module-equivalent wrapper
# ---------------------------------------------------------------------------
class RotaryEmbedding:
    def __init__(self, dim, theta=10000.0):
        assert dim % 2 == 0, "rotary dim must be even"
        self.dim = dim
        # theta *= 1.0 ** (dim / (dim - 2))  -> unchanged
        self.theta = theta * (1.0 ** (dim / (dim - 2)))
        # freqs parameter: 1 / theta^(arange(0, dim, 2)/dim), shape (dim//2,)
        self.freqs = 1.0 / (
            self.theta ** (jnp.arange(0, dim, 2, dtype=jnp.float32) / dim)
        )
        # scale buffer exists in the torch module but is unused on the default
        # rotary_embedding() path (scale=1.0); kept for parity.
        self.scale = (jnp.arange(0, dim, 2, dtype=jnp.float32) + 0.4 * dim) / (1.4 * dim)

    def _freqs_table(self, seq_len, offset=0):
        pos = jnp.arange(seq_len, dtype=jnp.float32) + offset
        f = pos[:, None] * self.freqs[None, :]
        return jnp.repeat(f, 2, axis=-1)                      # (S, dim)

    def rotary_embedding(self, t, offset=0):
        # t: (B, H, S, D) with D == self.dim (full rotary dim, start_index=0)
        # TODO(synk): seq_before_head_dim=True (seq_dim=-3), partial rotation
        #             (rot_dim < head_dim) and xpos scale!=1.0 are not implemented.
        B, H, S, D = t.shape
        assert D == self.dim, "head_dim must equal rotary dim for this kernel"
        return _rope_forward(t, self.freqs, jnp.float32(offset))


# ---------------------------------------------------------------------------
# Pure-JAX reference (mirrors the PyTorch code)
# ---------------------------------------------------------------------------
def _rotate_half_ref(x):
    x = x.reshape(*x.shape[:-1], x.shape[-1] // 2, 2)
    x1, x2 = x[..., 0], x[..., 1]
    x = jnp.stack((-x2, x1), axis=-1)
    return x.reshape(*x.shape[:-2], -1)


def _rope_ref(freqs, t):
    return t * jnp.cos(freqs) + _rotate_half_ref(t) * jnp.sin(freqs)


if __name__ == "__main__":
    B, H, S, D = 2, 4, 8, 32

    key = jax.random.PRNGKey(0)
    t = jax.random.normal(key, (B, H, S, D), dtype=jnp.float32)

    rope = RotaryEmbedding(dim=D)
    out = jax.block_until_ready(rope.rotary_embedding(t))

    ref = _rope_ref(rope._freqs_table(S), t)
    assert out.shape == t.shape and out.dtype == t.dtype
    assert jnp.allclose(out, ref, atol=1e-5, rtol=1e-5), "mismatch vs reference"

    print("KERNEL_OK")
</pallas_src>

<mosaic_0001>
module attributes {stable_mosaic.version = 11 : i64} {
  func.func @_rope_kernel(%arg0: i32, %arg1: i32, %arg2: memref<2x128xf32, #tpu.memory_space<vmem>>, %arg3: memref<2x128xf32, #tpu.memory_space<vmem>>, %arg4: memref<4x2x128xf32, #tpu.memory_space<vmem>>, %arg5: memref<4x2x128xf32, #tpu.memory_space<vmem>>) attributes {dimension_semantics = [#tpu.dimension_semantics<parallel>, #tpu.dimension_semantics<parallel>], iteration_bounds = array<i64: 1, 2>, scalar_prefetch = 0 : i64, scratch_operands = 0 : i64, tpu.core_type = #tpu.core_type<tc>, window_params = [{transform_indices = @transform_0, window_bounds = array<i64: 2, 128>}, {transform_indices = @transform_1, window_bounds = array<i64: 2, 128>}, {transform_indices = @transform_2, window_bounds = array<i64: 4, 2, 128>}, {transform_indices = @transform_3, window_bounds = array<i64: 4, 2, 128>}]} {
    %c0 = arith.constant 0 : index
    %c0_0 = arith.constant 0 : index
    %c0_1 = arith.constant 0 : index
    %0 = vector.load %arg4[%c0, %c0_0, %c0_1] : memref<4x2x128xf32, #tpu.memory_space<vmem>>, vector<4x2x128xf32>
    %c127_i32 = arith.constant 127 : i32
    %1 = tpu.dynamic_rotate %0 by %c127_i32 dim 2 : vector<4x2x128xf32>, i32 -> vector<4x2x128xf32>
    %c1_i32 = arith.constant 1 : i32
    %2 = tpu.dynamic_rotate %0 by %c1_i32 dim 2 : vector<4x2x128xf32>, i32 -> vector<4x2x128xf32>
    %3 = tpu.iota {dimensions = array<i32: 2>} : vector<4x2x128xi32>
    %c1_i32_2 = arith.constant 1 : i32
    %4 = vector.broadcast %c1_i32_2 : i32 to vector<4x2x128xi32>
    %5 = arith.andi %3, %4 : vector<4x2x128xi32>
    %c0_i32 = arith.constant 0 : i32
    %6 = vector.broadcast %c0_i32 : i32 to vector<4x2x128xi32>
    %7 = arith.cmpi eq, %5, %6 : vector<4x2x128xi32>
    %8 = arith.select %7, %1, %2 : vector<4x2x128xi1>, vector<4x2x128xf32>
    %c0_3 = arith.constant 0 : index
    %c0_4 = arith.constant 0 : index
    %9 = vector.load %arg2[%c0_3, %c0_4] : memref<2x128xf32, #tpu.memory_space<vmem>>, vector<2x128xf32>
    %10 = vector.shape_cast %9 : vector<2x128xf32> to vector<1x2x128xf32>
    %11 = vector.broadcast %10 : vector<1x2x128xf32> to vector<4x2x128xf32>
    %12 = arith.mulf %0, %11 : vector<4x2x128xf32>
    %c0_5 = arith.constant 0 : index
    %c0_6 = arith.constant 0 : index
    %13 = vector.load %arg3[%c0_5, %c0_6] : memref<2x128xf32, #tpu.memory_space<vmem>>, vector<2x128xf32>
    %14 = vector.shape_cast %13 : vector<2x128xf32> to vector<1x2x128xf32>
    %15 = vector.broadcast %14 : vector<1x2x128xf32> to vector<4x2x128xf32>
    %16 = arith.mulf %8, %15 : vector<4x2x128xf32>
    %17 = arith.addf %12, %16 : vector<4x2x128xf32>
    %c0_7 = arith.constant 0 : index
    %c0_8 = arith.constant 0 : index
    %c0_9 = arith.constant 0 : index
    %18 = vector.load %arg5[%c0_7, %c0_8, %c0_9] : memref<4x2x128xf32, #tpu.memory_space<vmem>>, vector<4x2x128xf32>
    tpu.vector_store %arg5[%c0_7, %c0_8, %c0_9], %17 {strides = array<i32>} : memref<4x2x128xf32, #tpu.memory_space<vmem>>, vector<4x2x128xf32>,
    return
  }
  func.func @transform_0(%arg0: i32, %arg1: i32) -> (i32, i32) {
    %c0_i32 = arith.constant 0 : i32
    %c0_i32_0 = arith.constant 0 : i32
    return %arg0, %c0_i32 : i32, i32
  }
  func.func @transform_1(%arg0: i32, %arg1: i32) -> (i32, i32) {
    %c0_i32 = arith.constant 0 : i32
    %c0_i32_0 = arith.constant 0 : i32
    return %arg0, %c0_i32 : i32, i32
  }
  func.func @transform_2(%arg0: i32, %arg1: i32) -> (i32, i32, i32) {
    %c0_i32 = arith.constant 0 : i32
    %c0_i32_0 = arith.constant 0 : i32
    return %arg1, %arg0, %c0_i32 : i32, i32, i32
  }
  func.func @transform_3(%arg0: i32, %arg1: i32) -> (i32, i32, i32) {
    %c0_i32 = arith.constant 0 : i32
    %c0_i32_0 = arith.constant 0 : i32
    return %arg1, %arg0, %c0_i32 : i32, i32, i32
  }
}

</mosaic_0001>

<llo_original>
// kernel: _rope_forward_impl.1
$region0: #{_rope_forward_impl.1}
  #allocation0 [shape = 'u32[]', space=smem, size = 0x4, offset = 0x4, fixed_abs, tag = 'smem constant byte address 0x4 - core index']
  #allocation1 [shape = 'u32[72,128]{1,0:T(1,128)}', space=vmem, size = 0x9000, scoped, tag = 'internal scratch']
  %s0 = inlined_call_operand.vmem [shape: f32[2,128], index: 0, kind: input, shape index: {}]
  %s1 = inlined_call_operand.vmem [shape: f32[2,128], index: 1, kind: input, shape index: {}]
  %s2 = inlined_call_operand.vmem [shape: f32[8,2,128], index: 2, kind: input, shape index: {}]
  %s3 = inlined_call_operand.vmem [shape: f32[8,2,128], index: 3, kind: output, shape index: {}]
  %s4 = sld [smem:[#allocation0]]
  $region45: #{_rope_forward_impl.1} parent=0
    _
  %s6 = ssub.s32 1, %s4
  %s7 = scalar_select 0, %s6, %s4
  loop: start=0, step=1, limit=4
  $region2: #{_rope_forward_impl.1} parent=0 // loop_pre_header
    _
  $region3: #{_rope_forward_impl.1} parent=0 // loop_header
    %s9 = sphi 0, %s13
    %p10 = scmp.ge.s32.totalorder %s9, 4
    %s16 = sphi 0, %s28
    %s17 = sphi 0, %s24
    %s18 = sphi 0, %s16
    %s19 = sphi 0, %s17
    %s20 = sphi 0, %s18
    %s21 = sphi 0, %s19
    %s31 = sphi 0, %s33
    %s34 = sphi 0, %s31
    %s35 = sphi 0, %s34
    %s51 = sphi 0, %s35
    %s57 = sphi 0, %s59
    %s60 = sphi 0, %s57
    %s61 = sphi 0, %s60
    %s77 = sphi 0, %s61
    %s85 = sphi 0, %s87
    %s88 = sphi 0, %s85
    %s89 = sphi 0, %s88
    %s105 = sphi 0, %s89
    %s113 = sphi 0, %s115
    %s116 = sphi 0, %s113
    %s117 = sphi 0, %s116
    %s133 = sphi 0, %s117
  $region4: #{_rope_forward_impl.1} parent=0 // loop_header_branch
    %12 = sbr.rel (%p10) target = $region8
  $region5: #{_rope_forward_impl.1} parent=0 // loop_body
    %s14 = ssub.s32 %s9, 1
    %s15 = ssub.s32 %s9, 2
    %s22 = sadd.s32 1, %s17
    %p23 = scmp.ge.s32.totalorder %s22, 2
    %s24 = scalar_select %p23, 0, %s22
    %s25 = sadd.s32 1, %s16
    %s26 = scalar_select %p23, %s25, %s16
    %p27 = scmp.ge.s32.totalorder %s26, 1
    %s28 = scalar_select %p27, 0, %s26
    %s29 = ssub.s32 %s16, %s28
    %p30 = scmp.eq.s32.totalorder %s29, 0
    %s32 = sadd.s32 %s31, 1
    %s33 = scalar_select %p30, %s31, %s32
    %p36 = pneg %p30
    %p37 = scmp.eq.s32.totalorder %s9, 1
    %p38 = por %p36, %p37
    %p39 = scmp.ne.s32.totalorder %s31, %s34
    %p40 = scmp.eq.s32.totalorder %s9, 0
    %p41 = por %p39, %p40
    %p42 = scmp.ne.s32.totalorder %s31, %s34
    %p43 = scmp.eq.s32.totalorder %s14, 1
    %p44 = por %p42, %p43
    %p45 = scmp.ne.s32.totalorder %s34, %s35
    %p46 = scmp.eq.s32.totalorder %s14, 0
    %p47 = por %p45, %p46
    %p48 = scmp.ne.s32.totalorder %s34, %s35
    %p49 = scmp.eq.s32.totalorder %s15, 1
    %p50 = por %p48, %p49
    %p52 = scmp.ne.s32.totalorder %s35, %s51
    %p53 = scmp.eq.s32.totalorder %s15, 0
    %p54 = por %p52, %p53
    %s55 = ssub.s32 %s16, %s28
    %p56 = scmp.eq.s32.totalorder %s55, 0
    %s58 = sadd.s32 %s57, 1
    %s59 = scalar_select %p56, %s57, %s58
    %p62 = pneg %p56
    %p63 = scmp.eq.s32.totalorder %s9, 1
    %p64 = por %p62, %p63
    %p65 = scmp.ne.s32.totalorder %s57, %s60
    %p66 = scmp.eq.s32.totalorder %s9, 0
    %p67 = por %p65, %p66
    %p68 = scmp.ne.s32.totalorder %s57, %s60
    %p69 = scmp.eq.s32.totalorder %s14, 1
    %p70 = por %p68, %p69
    %p71 = scmp.ne.s32.totalorder %s60, %s61
    %p72 = scmp.eq.s32.totalorder %s14, 0
    %p73 = por %p71, %p72
    %p74 = scmp.ne.s32.totalorder %s60, %s61
    %p75 = scmp.eq.s32.totalorder %s15, 1
    %p76 = por %p74, %p75
    %p78 = scmp.ne.s32.totalorder %s61, %s77
    %p79 = scmp.eq.s32.totalorder %s15, 0
    %p80 = por %p78, %p79
    %s81 = ssub.s32 %s17, %s24
    %s82 = ssub.s32 %s16, %s28
    %s83 = sor.u32 %s81, %s82
    %p84 = scmp.eq.s32.totalorder %s83, 0
    %s86 = sadd.s32 %s85, 1
    %s87 = scalar_select %p84, %s85, %s86
    %p90 = pneg %p84
    %p91 = scmp.eq.s32.totalorder %s9, 1
    %p92 = por %p90, %p91
    %p93 = scmp.ne.s32.totalorder %s85, %s88
    %p94 = scmp.eq.s32.totalorder %s9, 0
    %p95 = por %p93, %p94
    %p96 = scmp.ne.s32.totalorder %s85, %s88
    %p97 = scmp.eq.s32.totalorder %s14, 1
    %p98 = por %p96, %p97
    %p99 = scmp.ne.s32.totalorder %s88, %s89
    %p100 = scmp.eq.s32.totalorder %s14, 0
    %p101 = por %p99, %p100
    %p102 = scmp.ne.s32.totalorder %s88, %s89
    %p103 = scmp.eq.s32.totalorder %s15, 1
    %p104 = por %p102, %p103
    %p106 = scmp.ne.s32.totalorder %s89, %s105
    %p107 = scmp.eq.s32.totalorder %s15, 0
    %p108 = por %p106, %p107
    %s109 = ssub.s32 %s17, %s24
    %s110 = ssub.s32 %s16, %s28
    %s111 = sor.u32 %s109, %s110
    %p112 = scmp.eq.s32.totalorder %s111, 0
    %s114 = sadd.s32 %s113, 1
    %s115 = scalar_select %p112, %s113, %s114
    %p118 = pneg %p112
    %p119 = scmp.eq.s32.totalorder %s9, 1
    %p120 = por %p118, %p119
    %p121 = scmp.ne.s32.totalorder %s113, %s116
    %p122 = scmp.eq.s32.totalorder %s9, 0
    %p123 = por %p121, %p122
    %p124 = scmp.ne.s32.totalorder %s113, %s116
    %p125 = scmp.eq.s32.totalorder %s14, 1
    %p126 = por %p124, %p125
    %p127 = scmp.ne.s32.totalorder %s116, %s117
    %p128 = scmp.eq.s32.totalorder %s14, 0
    %p129 = por %p127, %p128
    %p130 = scmp.ne.s32.totalorder %s116, %s117
    %p131 = scmp.eq.s32.totalorder %s15, 1
    %p132 = por %p130, %p131
    %p134 = scmp.ne.s32.totalorder %s117, %s133
    %p135 = scmp.eq.s32.totalorder %s15, 0
    %p136 = por %p134, %p135
    %p137 = scmp.le.s32.totalorder 1, %s9
    %p138 = scmp.lt.s32.totalorder %s9, 3
    %p139 = pnand %p137, %p138
    %p140 = pneg %p139
    // Predicated region
    $region9: #{_rope_forward_impl.1} parent=5 // pred_check
      _
    $region10: #{_rope_forward_impl.1} parent=5 // pred_check_branch
      %142 = sbr.rel (%p139) target = $region12
    $region11: #{_rope_forward_impl.1} parent=5 // pred_region
      %s143 = ssub.s32 %s9, 1
      // Predicated region
      $region13: #{_rope_forward_impl.1} parent=11 // pred_check
        %p144 = pneg %p47
      $region14: #{_rope_forward_impl.1} parent=11 // pred_check_branch
        %146 = sbr.rel (%p144) target = $region16
      $region15: #{_rope_forward_impl.1} parent=11 // pred_region
        %p147 = scmp.lt.s32.totalorder %s18, 0
        %s148 = scalar_select %p147, %s18, 0
        %s149 = smul.addr %s148, 2
        %s150 = scalar_lea.vmem %s0, %s149
      $region16: #{_rope_forward_impl.1} parent=11 // pred_fallthru
        _
      // Predicated region
      $region17: #{_rope_forward_impl.1} parent=11 // pred_check
        %p151 = pneg %p73
      $region18: #{_rope_forward_impl.1} parent=11 // pred_check_branch
        %153 = sbr.rel (%p151) target = $region20
      $region19: #{_rope_forward_impl.1} parent=11 // pred_region
        %p154 = scmp.lt.s32.totalorder %s18, 0
        %s155 = scalar_select %p154, %s18, 0
        %s156 = smul.addr %s155, 2
        %s157 = scalar_lea.vmem %s1, %s156
      $region20: #{_rope_forward_impl.1} parent=11 // pred_fallthru
        _
    $region12: #{_rope_forward_impl.1} parent=5 // pred_fallthru
      _
    %p158 = scmp.lt.s32.totalorder %s9, 2
    // Predicated region
    $region21: #{_rope_forward_impl.1} parent=5 // pred_check
      %p159 = pneg %p158
    $region22: #{_rope_forward_impl.1} parent=5 // pred_check_branch
      %161 = sbr.rel (%p159) target = $region24
    $region23: #{_rope_forward_impl.1} parent=5 // pred_region
      // Predicated region
      $region25: #{_rope_forward_impl.1} parent=23 // pred_check
        %p162 = pneg %p95
      $region26: #{_rope_forward_impl.1} parent=23 // pred_check_branch
        %164 = sbr.rel (%p162) target = $region28
      $region27: #{_rope_forward_impl.1} parent=23 // pred_region
        %s165 = smul.u32 4, %s17
        %p166 = scmp.lt.s32.totalorder %s165, 7
        %s167 = scalar_select %p166, %s165, 7
        %p168 = scmp.lt.s32.totalorder %s16, 0
        %s169 = scalar_select %p168, %s16, 0
        %s170 = sadd.s32 %s169, %s167
        %s171 = smul.addr %s170, 2
        %s172 = scalar_lea.vmem %s2, %s171
        %s173 = smul.u32 4, %s17
      $region28: #{_rope_forward_impl.1} parent=23 // pred_fallthru
        _
    $region24: #{_rope_forward_impl.1} parent=5 // pred_fallthru
      _
    %p174 = scmp.le.s32.totalorder 1, %s9
    %p175 = scmp.lt.s32.totalorder %s9, 3
    %p176 = pnand %p174, %p175
    %p177 = pneg %p176
    // Predicated region
    $region29: #{_rope_forward_impl.1} parent=5 // pred_check
      _
    $region30: #{_rope_forward_impl.1} parent=5 // pred_check_branch
      %179 = sbr.rel (%p176) target = $region32
    $region31: #{_rope_forward_impl.1} parent=5 // pred_region
      %s180 = ssub.s32 %s9, 1
      %p181 = scmp.lt.s32.totalorder %s18, 0
      %s182 = scalar_select %p181, %s18, 0
      %s183 = smul.addr %s182, 2
      %s184 = scalar_lea.vmem %s0, %s183
      %p185 = pneg %p47
      %p186 = pneg %p44
      %p187 = scmp.lt.s32.totalorder %s18, 0
      %s188 = scalar_select %p187, %s18, 0
      %s189 = smul.addr %s188, 2
      %s190 = scalar_lea.vmem %s1, %s189
      %p191 = pneg %p73
      %p192 = pneg %p70
      %s193 = smul.u32 4, %s19
      %p194 = scmp.lt.s32.totalorder %s193, 7
      %s195 = scalar_select %p194, %s193, 7
      %p196 = scmp.lt.s32.totalorder %s18, 0
      %s197 = scalar_select %p196, %s18, 0
      %s198 = sadd.s32 %s197, %s195
      %s199 = smul.addr %s198, 2
      %s200 = scalar_lea.vmem %s2, %s199
      %p201 = pneg %p101
      %p202 = pneg %p98
      %p203 = pneg %p129
      %p204 = pneg %p126
      %s205 = smul.u32 4, %s19
      %p206 = scmp.lt.s32.totalorder %s205, 7
      %s207 = scalar_select %p206, %s205, 7
      %p208 = scmp.lt.s32.totalorder %s18, 0
      %s209 = scalar_select %p208, %s18, 0
      %s210 = sadd.s32 %s209, %s207
      %s211 = smul.addr %s210, 2
      %s212 = scalar_lea.vmem %s3, %s211
      %p213 = scmp.lt.s32.totalorder %s18, 0
      %s214 = scalar_select %p213, %s18, 0
      %s215 = smul.addr %s214, 2
      %s216 = scalar_lea.vmem %s0, %s215
      %p217 = scmp.lt.s32.totalorder %s18, 0
      %s218 = scalar_select %p217, %s18, 0
      %s219 = smul.addr %s218, 2
      %s220 = scalar_lea.vmem %s1, %s219
      %s221 = smul.u32 4, %s19
      %p222 = scmp.lt.s32.totalorder %s221, 7
      %s223 = scalar_select %p222, %s221, 7
      %p224 = scmp.lt.s32.totalorder %s18, 0
      %s225 = scalar_select %p224, %s18, 0
      %s226 = sadd.s32 %s225, %s223
      %s227 = smul.addr %s226, 2
      %s228 = scalar_lea.vmem %s2, %s227
      %s229 = smul.u32 4, %s19
      %s230 = smul.u32 4, %s19
      %p231 = scmp.lt.s32.totalorder %s230, 7
      %s232 = scalar_select %p231, %s230, 7
      %p233 = scmp.lt.s32.totalorder %s18, 0
      %s234 = scalar_select %p233, %s18, 0
      %s235 = sadd.s32 %s234, %s232
      %s236 = smul.addr %s235, 2
      %s237 = scalar_lea.vmem %s3, %s236
      %s238 = smul.u32 4, %s19
      %v239 = vld [vmem:[%s228] sm:$0x3]
      %v240 = vld [vmem:[%s228 + $0x2] sm:$0x3]
      %v241 = vld [vmem:[%s228 + $0x4] sm:$0x3]
      %v242 = vld [vmem:[%s228 + $0x6] sm:$0x3]
      %243 = vrot.lane.b32.xlu0 %v239, 127
      %v244 = vpop.permute.xlu0 %243
      %245 = vrot.lane.b32.xlu0 %v240, 127
      %v246 = vpop.permute.xlu0 %245
      %247 = vrot.lane.b32.xlu0 %v241, 127
      %v248 = vpop.permute.xlu0 %247
      %249 = vrot.lane.b32.xlu0 %v242, 127
      %v250 = vpop.permute.xlu0 %249
      %251 = vrot.lane.b32.xlu0 %v239, 1
      %v252 = vpop.permute.xlu0 %251
      %253 = vrot.lane.b32.xlu0 %v240, 1
      %v254 = vpop.permute.xlu0 %253
      %255 = vrot.lane.b32.xlu0 %v241, 1
      %v256 = vpop.permute.xlu0 %255
      %257 = vrot.lane.b32.xlu0 %v242, 1
      %v258 = vpop.permute.xlu0 %257
      %v259 = vlaneseq
      %v260 = vand.u32 %v259, 127
      %v261 = vand.u32 %v260, 1
      %vm262 = vcmp.eq.s32.totalorder %v261, 0
      %v263 = vsel %vm262, %v244, %v252
      %v264 = vsel %vm262, %v246, %v254
      %v265 = vsel %vm262, %v248, %v256
      %v266 = vsel %vm262, %v250, %v258
      %v267 = vld [vmem:[%s216] sm:$0x3]
      %v268 = vmul.f32 %v239, %v267
      %v269 = vmul.f32 %v240, %v267
      %v270 = vmul.f32 %v241, %v267
      %v271 = vmul.f32 %v242, %v267
      %v272 = vld [vmem:[%s220] sm:$0x3]
      %v273 = vmul.f32 %v263, %v272
      %v274 = vmul.f32 %v264, %v272
      %v275 = vmul.f32 %v265, %v272
      %v276 = vmul.f32 %v266, %v272
      %v277 = vadd.f32 %v268, %v273
      %v278 = vadd.f32 %v269, %v274
      %v279 = vadd.f32 %v270, %v275
      %v280 = vadd.f32 %v271, %v276
      %281 = vst [vmem:[%s237] sm:$0x3] %v277
      %282 = vst [vmem:[%s237 + $0x2] sm:$0x3] %v278
      %283 = vst [vmem:[%s237 + $0x4] sm:$0x3] %v279
      %284 = vst [vmem:[%s237 + $0x6] sm:$0x3] %v280
      %s285 = smul.u32 4, %s19
      %p286 = scmp.lt.s32.totalorder %s285, 7
      %s287 = scalar_select %p286, %s285, 7
      %p288 = scmp.lt.s32.totalorder %s18, 0
      %s289 = scalar_select %p288, %s18, 0
      %s290 = sadd.s32 %s289, %s287
      %s291 = smul.addr %s290, 2
      %s292 = scalar_lea.vmem %s3, %s291
      // Predicated region
      $region33: #{_rope_forward_impl.1} parent=31 // pred_check
        %p293 = pneg %p126
      $region34: #{_rope_forward_impl.1} parent=31 // pred_check_branch
        %295 = sbr.rel (%p293) target = $region36
      $region35: #{_rope_forward_impl.1} parent=31 // pred_region
        %s296 = smul.u32 4, %s19
      $region36: #{_rope_forward_impl.1} parent=31 // pred_fallthru
        _
    $region32: #{_rope_forward_impl.1} parent=5 // pred_fallthru
      _
    %p297 = scmp.le.s32.totalorder 2, %s9
    // Predicated region
    $region37: #{_rope_forward_impl.1} parent=5 // pred_check
      %p298 = pneg %p297
    $region38: #{_rope_forward_impl.1} parent=5 // pred_check_branch
      %300 = sbr.rel (%p298) target = $region40
    $region39: #{_rope_forward_impl.1} parent=5 // pred_region
      %s301 = ssub.s32 %s9, 2
      // Predicated region
      $region41: #{_rope_forward_impl.1} parent=39 // pred_check
        %p302 = pneg %p132
      $region42: #{_rope_forward_impl.1} parent=39 // pred_check_branch
        %304 = sbr.rel (%p302) target = $region44
      $region43: #{_rope_forward_impl.1} parent=39 // pred_region
        %s305 = smul.u32 4, %s21
        %p306 = scmp.lt.s32.totalorder %s305, 7
        %s307 = scalar_select %p306, %s305, 7
        %p308 = scmp.lt.s32.totalorder %s20, 0
        %s309 = scalar_select %p308, %s20, 0
        %s310 = sadd.s32 %s309, %s307
        %s311 = smul.addr %s310, 2
        %s312 = scalar_lea.vmem %s3, %s311
      $region44: #{_rope_forward_impl.1} parent=39 // pred_fallthru
        _
    $region40: #{_rope_forward_impl.1} parent=5 // pred_fallthru
      _
  $region6: #{_rope_forward_impl.1} parent=0 // loop_footer
    %s13 = sadd.s32 1, %s9
  $region7: #{_rope_forward_impl.1} parent=0 // loop_footer_branch
    %8 = sbr.rel target = $region3
  $region8: #{_rope_forward_impl.1} parent=0 // loop_exit
    _

</llo_original>
